<compile_context>
chip_gen: v5e
topology: v5e:2x2
jax: 0.10.0
libtpu: 0.0.40
codegen_flags: <defaults>
</compile_context>

<pallas_src>
import jax
import jax.numpy as jnp
from jax import lax
from jax.experimental import pallas as pl
from jax.experimental.pallas import tpu as pltpu


def _round_up(a, b):
    return (a + b - 1) // b * b


def _log_prob_t(x_block, w_block, b_block):
    """Return log_softmax(logits)^T with shape (C, tm), f32."""
    # logits^T = W (C,F) . x^T (F,tm)  -- A.B^T form, MXU, f32 accumulation.
    logits = lax.dot_general(
        w_block, x_block,
        dimension_numbers=(((1,), (1,)), ((), ())),
        preferred_element_type=jnp.float32)
    logits = logits + b_block.astype(jnp.float32)          # (C,1) bias, lane-broadcast
    cmax = jnp.max(logits, axis=0, keepdims=True)          # (1, tm)
    shifted = logits - cmax
    lse = jnp.log(jnp.sum(jnp.exp(shifted), axis=0, keepdims=True))
    return shifted - lse                                   # (C, tm)


def _loss_kernel(x_ref, w_ref, b_ref, t_ref, o_ref):
    logp = _log_prob_t(x_ref[...], w_ref[...], b_ref[...])
    o_ref[...] = -jnp.sum(t_ref[...].astype(jnp.float32) * logp,
                          axis=0, keepdims=True)           # (1, tm) lane-dense


def _loss_kernel_masked(x_ref, w_ref, b_ref, t_ref, m_ref, o_ref):
    logp = _log_prob_t(x_ref[...], w_ref[...], b_ref[...])
    loss = -jnp.sum(t_ref[...].astype(jnp.float32) * logp,
                    axis=0, keepdims=True)                  # (1, tm)
    o_ref[...] = loss * m_ref[...].astype(jnp.float32)


def inter_prob_cross_entropy_loss(x, weight, bias, target, mask=None, *, tm=256):
    """x: [N, F]; weight: [C, F] (PyTorch nn.Linear layout); bias: [C];
    target: [N, C]; mask: [N] or None.  Returns per-sample loss [N] (f32)."""
    N, F = x.shape
    C, F_w = weight.shape
    assert F_w == F and target.shape == (N, C)

    # Row tile: lane-dense multiple of 128 for big N, single block for small N.
    n8 = _round_up(N, 8)
    if n8 <= tm:
        tm = n8
    else:
        tm = _round_up(tm, 128)
    n_pad = _round_up(N, tm)
    g = n_pad // tm

    if mask is not None:
        mask = mask.reshape(-1)

    if n_pad != N:
        x = jnp.pad(x, ((0, n_pad - N), (0, 0)))
        target = jnp.pad(target, ((0, n_pad - N), (0, 0)))
        if mask is not None:
            mask = jnp.pad(mask, (0, n_pad - N))

    # Layout plumbing (wrapper-side): class-major target, column bias.
    target_t = target.T                       # (C, n_pad): row tile lands on lanes
    bias_col = bias.reshape(C, 1)

    in_specs = [
        pl.BlockSpec((tm, F), lambda i: (i, 0)),     # x row tile
        pl.BlockSpec((C, F), lambda i: (0, 0)),      # weight, resident (DMA'd once)
        pl.BlockSpec((C, 1), lambda i: (0, 0)),      # bias column
        pl.BlockSpec((C, tm), lambda i: (0, i)),     # target^T column tile
    ]
    args = [x, weight, bias_col, target_t]
    if mask is not None:
        mask2d = mask.reshape(g, tm)                 # lane-dense mask rows
        in_specs.append(pl.BlockSpec((1, tm), lambda i: (i, 0)))
        args.append(mask2d)
        kernel = _loss_kernel_masked
    else:
        kernel = _loss_kernel

    # VMEM budget: double-buffered streaming blocks + resident weight + f32 temps.
    est = (2 * tm * F * x.dtype.itemsize
           + 2 * C * tm * target.dtype.itemsize
           + 2 * C * F * weight.dtype.itemsize
           + 2 * C * 4
           + 2 * tm * 4 * (2 if mask is not None else 1)
           + 4 * C * tm * 4)
    vmem_limit = int(min(56 * 2**20, max(32 * 2**20, 2 * est)))

    out = pl.pallas_call(
        kernel,
        out_shape=jax.ShapeDtypeStruct((g, tm), jnp.float32),
        grid_spec=pltpu.PrefetchScalarGridSpec(
            num_scalar_prefetch=0,
            grid=(g,),
            in_specs=in_specs,
            out_specs=pl.BlockSpec((1, tm), lambda i: (i, 0)),
        ),
        compiler_params=pltpu.CompilerParams(
            dimension_semantics=("parallel",),
            vmem_limit_bytes=vmem_limit),
    )(*args)

    return out.reshape(n_pad)[:N]


def _reference(x, weight, bias, target, mask=None):
    logits = x @ weight.T + bias
    log_prob = jax.nn.log_softmax(logits, axis=-1)
    loss = -(target * log_prob).sum(-1)
    if mask is not None:
        loss = loss * mask.reshape(-1)
    return loss


if __name__ == "__main__":
    key = jax.random.PRNGKey(0)
    k_x, k_w, k_b, k_t, k_m, k_x2, k_t2, k_m2 = jax.random.split(key, 8)

    # Case 1: small shapes from the module spec (batch=16, in_features=32, classes=16).
    N, F, C = 16, 32, 16
    bound = 1.0 / (F ** 0.5)
    weight = jax.random.uniform(k_w, (C, F), jnp.float32, -bound, bound)  # PyTorch layout
    bias = jax.random.uniform(k_b, (C,), jnp.float32, -bound, bound)
    x = jax.random.normal(k_x, (N, F), jnp.float32)
    target = jax.nn.softmax(jax.random.normal(k_t, (N, C), jnp.float32), axis=-1)
    mask = (jax.random.uniform(k_m, (N,)) > 0.3).astype(jnp.float32)

    out_m = jax.block_until_ready(
        inter_prob_cross_entropy_loss(x, weight, bias, target, mask))
    out_n = jax.block_until_ready(
        inter_prob_cross_entropy_loss(x, weight, bias, target, None))
    ref_m = _reference(x, weight, bias, target, mask)
    ref_n = _reference(x, weight, bias, target, None)
    assert out_m.shape == (N,) and out_n.shape == (N,)
    assert jnp.allclose(out_m, ref_m, atol=1e-4, rtol=1e-4), (out_m, ref_m)
    assert jnp.allclose(out_n, ref_n, atol=1e-4, rtol=1e-4), (out_n, ref_n)

    # Case 2: N not a multiple of the tile -> padding + multi-step grid.
    N2, F2, C2 = 200, 64, 48
    x2 = jax.random.normal(k_x2, (N2, F2), jnp.float32)
    w2 = jax.random.uniform(k_w, (C2, F2), jnp.float32, -0.1, 0.1)
    b2 = jax.random.uniform(k_b, (C2,), jnp.float32, -0.1, 0.1)
    t2 = jax.nn.softmax(jax.random.normal(k_t2, (N2, C2), jnp.float32), axis=-1)
    m2 = (jax.random.uniform(k_m2, (N2,)) > 0.5).astype(jnp.float32)
    out2 = jax.block_until_ready(
        inter_prob_cross_entropy_loss(x2, w2, b2, t2, m2, tm=128))
    ref2 = _reference(x2, w2, b2, t2, m2)
    assert out2.shape == (N2,)
    assert jnp.allclose(out2, ref2, atol=1e-4, rtol=1e-4), (out2, ref2)

    print("KERNEL_OK")
</pallas_src>

<mosaic_0001>
module attributes {stable_mosaic.version = 11 : i64} {
  func.func @_loss_kernel_masked(%arg0: i32, %arg1: memref<16x32xf32, #tpu.memory_space<vmem>>, %arg2: memref<16x32xf32, #tpu.memory_space<vmem>>, %arg3: memref<16x1xf32, #tpu.memory_space<vmem>>, %arg4: memref<16x16xf32, #tpu.memory_space<vmem>>, %arg5: memref<1x16xf32, #tpu.memory_space<vmem>>, %arg6: memref<1x16xf32, #tpu.memory_space<vmem>>) attributes {dimension_semantics = [#tpu.dimension_semantics<parallel>], iteration_bounds = array<i64: 1>, scalar_prefetch = 0 : i64, scratch_operands = 0 : i64, tpu.core_type = #tpu.core_type<tc>, window_params = [{transform_indices = @transform_0, window_bounds = array<i64: 16, 32>}, {pipeline_mode = #tpu.pipeline_mode<synchronous>, transform_indices = @transform_1, window_bounds = array<i64: 16, 32>}, {pipeline_mode = #tpu.pipeline_mode<synchronous>, transform_indices = @transform_2, window_bounds = array<i64: 16, 1>}, {transform_indices = @transform_3, window_bounds = array<i64: 16, 16>}, {transform_indices = @transform_4, window_bounds = array<i64: 1, 16>}, {transform_indices = @transform_5, window_bounds = array<i64: 1, 16>}]} {
    %c0 = arith.constant 0 : index
    %c0_0 = arith.constant 0 : index
    %0 = vector.load %arg1[%c0, %c0_0] : memref<16x32xf32, #tpu.memory_space<vmem>>, vector<16x32xf32>
    %c0_1 = arith.constant 0 : index
    %c0_2 = arith.constant 0 : index
    %1 = vector.load %arg2[%c0_1, %c0_2] : memref<16x32xf32, #tpu.memory_space<vmem>>, vector<16x32xf32>
    %c0_3 = arith.constant 0 : index
    %c0_4 = arith.constant 0 : index
    %2 = vector.load %arg3[%c0_3, %c0_4] : memref<16x1xf32, #tpu.memory_space<vmem>>, vector<16x1xf32>
    %cst = arith.constant dense<0.000000e+00> : vector<16x16xf32>
    %3 = tpu.matmul %1, %0, %cst {dimension_numbers = #tpu.dot_dimension_numbers<[1], [1], [0], [0], [0, 0, 1, 0], [], []>} : vector<16x32xf32>, vector<16x32xf32>, vector<16x16xf32> -> vector<16x16xf32>
    %4 = vector.broadcast %2 : vector<16x1xf32> to vector<16x16xf32>
    %5 = arith.addf %3, %4 : vector<16x16xf32>
    %cst_5 = arith.constant dense<0xFF800000> : vector<16xf32>
    %6 = vector.multi_reduction <maximumf>, %5, %cst_5 [0] : vector<16x16xf32> to vector<16xf32>
    %7 = vector.shape_cast %6 : vector<16xf32> to vector<1x16xf32>
    %8 = vector.broadcast %7 : vector<1x16xf32> to vector<16x16xf32>
    %9 = arith.subf %5, %8 : vector<16x16xf32>
    %10 = math.exp %9 : vector<16x16xf32>
    %cst_6 = arith.constant dense<0.000000e+00> : vector<16xf32>
    %11 = vector.multi_reduction <add>, %10, %cst_6 [0] : vector<16x16xf32> to vector<16xf32>
    %12 = vector.shape_cast %11 : vector<16xf32> to vector<1x16xf32>
    %13 = math.log %12 : vector<1x16xf32>
    %14 = vector.broadcast %13 : vector<1x16xf32> to vector<16x16xf32>
    %15 = arith.subf %9, %14 : vector<16x16xf32>
    %c0_7 = arith.constant 0 : index
    %c0_8 = arith.constant 0 : index
    %16 = vector.load %arg4[%c0_7, %c0_8] : memref<16x16xf32, #tpu.memory_space<vmem>>, vector<16x16xf32>
    %17 = arith.mulf %16, %15 : vector<16x16xf32>
    %cst_9 = arith.constant dense<0.000000e+00> : vector<16xf32>
    %18 = vector.multi_reduction <add>, %17, %cst_9 [0] : vector<16x16xf32> to vector<16xf32>
    %19 = vector.shape_cast %18 : vector<16xf32> to vector<1x16xf32>
    %cst_10 = arith.constant 0.000000e+00 : f32
    %20 = vector.broadcast %cst_10 : f32 to vector<1x16xf32>
    %21 = arith.subf %20, %19 : vector<1x16xf32>
    %c0_11 = arith.constant 0 : index
    %c0_12 = arith.constant 0 : index
    %22 = vector.load %arg5[%c0_11, %c0_12] : memref<1x16xf32, #tpu.memory_space<vmem>>, vector<1x16xf32>
    %23 = arith.mulf %21, %22 : vector<1x16xf32>
    %c0_13 = arith.constant 0 : index
    %c0_14 = arith.constant 0 : index
    %24 = vector.load %arg6[%c0_13, %c0_14] : memref<1x16xf32, #tpu.memory_space<vmem>>, vector<1x16xf32>
    tpu.vector_store %arg6[%c0_13, %c0_14], %23 {strides = array<i32>} : memref<1x16xf32, #tpu.memory_space<vmem>>, vector<1x16xf32>,
    return
  }
  func.func @transform_0(%arg0: i32) -> (i32, i32) {
    %c0_i32 = arith.constant 0 : i32
    %c0_i32_0 = arith.constant 0 : i32
    return %arg0, %c0_i32 : i32, i32
  }
  func.func @transform_1(%arg0: i32) -> (i32, i32) {
    %c0_i32 = arith.constant 0 : i32
    %c0_i32_0 = arith.constant 0 : i32
    %c0_i32_1 = arith.constant 0 : i32
    return %c0_i32, %c0_i32_0 : i32, i32
  }
  func.func @transform_2(%arg0: i32) -> (i32, i32) {
    %c0_i32 = arith.constant 0 : i32
    %c0_i32_0 = arith.constant 0 : i32
    %c0_i32_1 = arith.constant 0 : i32
    return %c0_i32, %c0_i32_0 : i32, i32
  }
  func.func @transform_3(%arg0: i32) -> (i32, i32) {
    %c0_i32 = arith.constant 0 : i32
    %c0_i32_0 = arith.constant 0 : i32
    return %c0_i32, %arg0 : i32, i32
  }
  func.func @transform_4(%arg0: i32) -> (i32, i32) {
    %c0_i32 = arith.constant 0 : i32
    %c0_i32_0 = arith.constant 0 : i32
    return %arg0, %c0_i32 : i32, i32
  }
  func.func @transform_5(%arg0: i32) -> (i32, i32) {
    %c0_i32 = arith.constant 0 : i32
    %c0_i32_0 = arith.constant 0 : i32
    return %arg0, %c0_i32 : i32, i32
  }
}

</mosaic_0001>

<llo_original>
// kernel: tpu_custom_call.1
$region0: #{tpu_custom_call.1}
  #allocation0 [shape = 'u32[]', space=smem, size = 0x4, offset = 0x4, fixed_abs, tag = 'smem constant byte address 0x4 - core index']
  #allocation1 [shape = 'u32[72,128]{1,0:T(1,128)}', space=vmem, size = 0x9000, scoped, tag = 'internal scratch']
  %s0 = inlined_call_operand.vmem [shape: f32[16,32], index: 0, kind: input, shape index: {}]
  %s1 = inlined_call_operand.hbm [shape: f32[16,32], index: 1, kind: input, shape index: {}]
  %s2 = inlined_call_operand.vmem [shape: f32[16,1], index: 2, kind: input, shape index: {}]
  %s3 = inlined_call_operand.hbm [shape: f32[16,16], index: 3, kind: input, shape index: {}]
  %s4 = inlined_call_operand.vmem [shape: f32[1,16], index: 4, kind: input, shape index: {}]
  %s5 = inlined_call_operand.hbm [shape: f32[1,16], index: 5, kind: output, shape index: {}]
  %s6 = sld [smem:[#allocation0]]
  $region38: #{tpu_custom_call.1} parent=0
    _
  %s8 = ssub.s32 1, %s6
  %s9 = scalar_select 0, %s8, %s6
  $region1: #{tpu_custom_call.1} parent=0
    #allocation2 [shape = 'u8[8192]{0}', space=vmem, size = 0x2000, scoped, tag = 'input window, operand 1, single buffered']
    #allocation3 [shape = 's32[1]{0}', space=sflag, size = 0x4, scoped, tag = 'scoped memory for tpu_custom_call.1']
    #allocation4 [shape = 's32[1]{0}', space=sflag, size = 0x4, scoped, tag = 'scoped memory for tpu_custom_call.1']
    #allocation5 [shape = 'u8[8192]{0}', space=vmem, size = 0x2000, scoped, tag = 'input window, operand 3, single buffered']
    #allocation6 [shape = 's32[1]{0}', space=sflag, size = 0x4, scoped, tag = 'scoped memory for tpu_custom_call.1']
    #allocation7 [shape = 'u8[512]{0}', space=vmem, size = 0x400, scoped, tag = 'output window, operand 0, single buffered']
    %10 = vsyncpa [#allocation3], 0
    %11 = vsyncpa [#allocation6], 0
    %12 = vsyncpa [#allocation4], 0
    // Predicated region
    $region2: #{tpu_custom_call.1} parent=1 // pred_check
      _
    $region3: #{tpu_custom_call.1} parent=1 // pred_check_branch
      %14 = sbr.rel (0) target = $region5
    $region4: #{tpu_custom_call.1} parent=1 // pred_region
      _
    $region5: #{tpu_custom_call.1} parent=1 // pred_fallthru
      _
    // Predicated region
    $region6: #{tpu_custom_call.1} parent=1 // pred_check
      _
    $region7: #{tpu_custom_call.1} parent=1 // pred_check_branch
      %16 = sbr.rel (0) target = $region9
    $region8: #{tpu_custom_call.1} parent=1 // pred_region
      %18 = vsyncadd [#allocation3], 0
      %s19 = sshll.u32 %s1, 4
      %s20 = int_to_ptr.hbm [resolvable:$true] %s19
      %s21 = sshll.u32 [#allocation2], 4
      %s22 = int_to_ptr.vmem [resolvable:$true] %s21
      %27 = dma.hbm_to_vmem [thread:$0]  %s20, 256, %s22, [#allocation3], 128, 128, 8
    $region9: #{tpu_custom_call.1} parent=1 // pred_fallthru
      _
    // Predicated region
    $region10: #{tpu_custom_call.1} parent=1 // pred_check
      _
    $region11: #{tpu_custom_call.1} parent=1 // pred_check_branch
      %29 = sbr.rel (0) target = $region13
    $region12: #{tpu_custom_call.1} parent=1 // pred_region
      _
    $region13: #{tpu_custom_call.1} parent=1 // pred_fallthru
      _
    // Predicated region
    $region14: #{tpu_custom_call.1} parent=1 // pred_check
      _
    $region15: #{tpu_custom_call.1} parent=1 // pred_check_branch
      %31 = sbr.rel (0) target = $region17
    $region16: #{tpu_custom_call.1} parent=1 // pred_region
      %33 = vsyncadd [#allocation6], 0
      %s34 = sshll.u32 %s3, 4
      %s35 = int_to_ptr.hbm [resolvable:$true] %s34
      %s36 = sshll.u32 [#allocation5], 4
      %s37 = int_to_ptr.vmem [resolvable:$true] %s36
      %42 = dma.hbm_to_vmem [thread:$0]  %s35, 256, %s37, [#allocation6], 128, 128, 8
    $region17: #{tpu_custom_call.1} parent=1 // pred_fallthru
      _
    // Predicated region
    $region18: #{tpu_custom_call.1} parent=1 // pred_check
      _
    $region19: #{tpu_custom_call.1} parent=1 // pred_check_branch
      %44 = sbr.rel (0) target = $region21
    $region20: #{tpu_custom_call.1} parent=1 // pred_region
      _
    $region21: #{tpu_custom_call.1} parent=1 // pred_fallthru
      _
    // Predicated region
    $region22: #{tpu_custom_call.1} parent=1 // pred_check
      _
    $region23: #{tpu_custom_call.1} parent=1 // pred_check_branch
      %46 = sbr.rel (0) target = $region25
    $region24: #{tpu_custom_call.1} parent=1 // pred_region
      %48 = dma.done [#allocation3], 256
    $region25: #{tpu_custom_call.1} parent=1 // pred_fallthru
      _
    // Predicated region
    $region26: #{tpu_custom_call.1} parent=1 // pred_check
      _
    $region27: #{tpu_custom_call.1} parent=1 // pred_check_branch
      %50 = sbr.rel (0) target = $region29
    $region28: #{tpu_custom_call.1} parent=1 // pred_region
      %52 = dma.done [#allocation6], 256
    $region29: #{tpu_custom_call.1} parent=1 // pred_fallthru
      _
    %v53 = vld [vmem:[%s0] sm:$0xff]
    %v54 = vld [vmem:[%s0 + $0x8] sm:$0xff]
    %v55 = vld [vmem:[#allocation2] sm:$0xff]
    %v56 = vld [vmem:[#allocation2 + $0x8] sm:$0xff]
    %v57 = vld [vmem:[%s2] sm:$0xff]
    %v58 = vld [vmem:[%s2 + $0x8] sm:$0xff]
    %60 = vset.pattern.permute.xlu0 0
    %61 = vperm.xlu0 %60, %v57
    %v62 = vpop.permute.xlu0 %61
    %65 = vset.pattern.permute.xlu0 0
    %66 = vperm.xlu0 %65, %v58
    %v67 = vpop.permute.xlu0 %66
    %vm69 = vcmask 261120
    %v71 = vsel %vm69, %v55, 0
    %v74 = vsel %vm69, %v56, 0
    %v77 = vsel %vm69, %v53, 0
    %v80 = vsel %vm69, %v54, 0
    %82 = vmatpush.xpose.msra.mxu0 0.0
    %83 = vmatpush.xpose.msra.mxu0 0.0
    %84 = vmatpush.xpose.msra.mxu0 0.0
    %85 = vmatpush.xpose.msra.mxu0 0.0
    %86 = vmatpush.xpose.msra.mxu0 0.0
    %87 = vmatpush.xpose.msra.mxu0 0.0
    %88 = vmatpush.xpose.msra.mxu0 0.0
    %89 = vmatpush.xpose.msra.mxu0 0.0
    %90 = vmatpush.xpose.msra.mxu0 0.0
    %91 = vmatpush.xpose.msra.mxu0 0.0
    %92 = vmatpush.xpose.msra.mxu0 0.0
    %93 = vmatpush.xpose.msra.mxu0 0.0
    %94 = vmatpush.xpose.msra.mxu0 0.0
    %95 = vmatpush.xpose.msra.mxu0 0.0
    %96 = vmatpush.xpose.msra.mxu0 %v80
    %97 = vmatpush.xpose.msra.mxu0 %v77
    %98 = vmatmul.f32.gmra.mxu0 %v71
    %v99 = vpop.f32.mrf.mxu0
    %v100 = vadd.f32 %v62, %v99
    %101 = vmatmul.f32.gmra.mxu0 %v74
    %v102 = vpop.f32.mrf.mxu0
    %v103 = vadd.f32 %v67, %v102
    %104 = vdwg.mxu0
    %vm105 = vcmask 130048
    %v106 = vsel %vm105, %v100, -inf
    %v107 = vsel %vm105, %v103, -inf
    %v108 = vmax.f32 %v106, %v107
    %v109 = vrot.slane %v108, 4
    %v110 = vmax.f32 %v108, %v109
    %v111 = vrot.slane %v110, 2
    %v112 = vmax.f32 %v110, %v111
    %v113 = vrot.slane %v112, 1
    %v114 = vmax.f32 %v112, %v113
    %v115 = vsub.f32 %v100, %v114
    %v116 = vsub.f32 %v103, %v114
    %v117 = vmul.f32 %v115, 1.442695
    %v118 = vpow.pop %v117
    %v119 = vmul.f32 %v116, 1.442695
    %v120 = vpow.pop %v119
    %v121 = vsel %vm105, %v118, 0.0
    %v122 = vsel %vm105, %v120, 0.0
    %v123 = vadd.f32 %v121, %v122
    %v124 = vrot.slane %v123, 4
    %v125 = vadd.f32 %v123, %v124
    %v126 = vrot.slane %v125, 2
    %v127 = vadd.f32 %v125, %v126
    %v128 = vrot.slane %v127, 1
    %v129 = vadd.f32 %v127, %v128
    %v130 = vlog2.pop %v129
    %v131 = vmul.f32 %v130, 0.6931472
    %v132 = vsub.f32 %v115, %v131
    %v133 = vsub.f32 %v116, %v131
    %v134 = vld [vmem:[#allocation5] sm:$0xff]
    %v135 = vld [vmem:[#allocation5 + $0x8] sm:$0xff]
    %v136 = vmul.f32 %v134, %v132
    %v137 = vmul.f32 %v135, %v133
    %v138 = vsel %vm105, %v136, 0.0
    %v139 = vsel %vm105, %v137, 0.0
    %v140 = vadd.f32 %v138, %v139
    %v141 = vrot.slane %v140, 4
    %v142 = vadd.f32 %v140, %v141
    %v143 = vrot.slane %v142, 2
    %v144 = vadd.f32 %v142, %v143
    %v145 = vrot.slane %v144, 1
    %v146 = vadd.f32 %v144, %v145
    %v147 = vsub.f32 0.0, %v146
    %v148 = vld [vmem:[%s4] sm:$0x1]
    %v149 = vmul.f32 %v147, %v148
    %vm150 = vcmask 122880
    %151 = vst.msk [vmem:[#allocation7] sm:$0x1] %vm150, %v149
    // Predicated region
    $region30: #{tpu_custom_call.1} parent=1 // pred_check
      _
    $region31: #{tpu_custom_call.1} parent=1 // pred_check_branch
      %153 = sbr.rel (0) target = $region33
    $region32: #{tpu_custom_call.1} parent=1 // pred_region
      %155 = vsyncadd [#allocation4], 0
      %s157 = sshll.u32 [#allocation7], 4
      %s158 = int_to_ptr.vmem [resolvable:$true] %s157
      %s159 = sshll.u32 %s5, 4
      %s160 = int_to_ptr.hbm [resolvable:$true] %s159
      %162 = dma.vmem_to_hbm [thread:$0]  %s158, 16, %s160, [#allocation4]
    $region33: #{tpu_custom_call.1} parent=1 // pred_fallthru
      _
    // Predicated region
    $region34: #{tpu_custom_call.1} parent=1 // pred_check
      _
    $region35: #{tpu_custom_call.1} parent=1 // pred_check_branch
      %164 = sbr.rel (0) target = $region37
    $region36: #{tpu_custom_call.1} parent=1 // pred_region
      %166 = dma.done [#allocation4], 16
    $region37: #{tpu_custom_call.1} parent=1 // pred_fallthru
      _
    %167 = vsyncpa [#allocation3], 1
    %168 = vsyncpa [#allocation6], 1
    %169 = vsyncpa [#allocation4], 1

</llo_original>
